<compile_context>
chip_gen: v5e
topology: v5e:2x2
jax: 0.10.0
libtpu: 0.0.40
codegen_flags: <defaults>
</compile_context>

<pallas_src>
import jax
import jax.numpy as jnp
from jax.experimental import pallas as pl
from jax.experimental.pallas import tpu as pltpu


def _round_up(x, m):
    return (x + m - 1) // m * m


# --------------------------------------------------------------------------
# Kernel 2: bnneck (BatchNorm1d, training-mode batch statistics, eps=1e-5).
# Runs once on the real [B, D] global-feature slab; emits bf16 feat for the
# classifier matmul.  running_mean/var updates are not part of forward math.
# --------------------------------------------------------------------------
def bn_kernel(gf_ref, gamma_ref, beta_ref, feat_ref):
    gf = gf_ref[...]                                          # [B, D] f32
    b = gf.shape[0]
    mean = jnp.sum(gf, axis=0, keepdims=True) * (1.0 / b)
    var = jnp.sum((gf - mean) ** 2, axis=0, keepdims=True) * (1.0 / b)  # biased
    feat = (gf - mean) * jax.lax.rsqrt(var + 1e-5)
    feat = feat * gamma_ref[...] + beta_ref[...]              # affine
    feat_ref[...] = feat.astype(feat_ref.dtype)


# --------------------------------------------------------------------------
# Kernel 3: classifier Linear(in_planes, num_classes, bias=False), class-tiled.
# bf16 operands, f32 accumulation/output.
# --------------------------------------------------------------------------
def cls_kernel(feat_ref, wcls_ref, cls_ref):
    cls_ref[...] = jnp.dot(feat_ref[...], wcls_ref[...],
                           preferred_element_type=jnp.float32)


def build_transformer_forward(x, params):
    """x: [B, C, H, W] float32 (NCHW).  Returns (cls_score, global_feat)."""
    B, C, H, W = x.shape
    P = params["patch"]
    nH, nW = H // P, W // P
    N = nH * nW
    CPP = C * P * P

    # bf16 BEFORE patchify: halves the HBM traffic of the wrapper-side
    # reshape/transpose round trip over the largest tensor.
    xb = x.astype(jnp.bfloat16)
    # NCHW -> [N_tokens, B, C*P*P]; token axis leading so the kernel can index
    # single tokens along axis 0 of its block.
    xp = xb.reshape(B, C, nH, P, nW, P)
    xp = jnp.transpose(xp, (2, 4, 0, 1, 3, 5)).reshape(N, B, CPP)

    w_pe = params["w_pe"].astype(jnp.bfloat16)                # [CPP, D]
    b_pe = params["b_pe"].astype(jnp.float32)                 # [1, D]
    D = w_pe.shape[1]

    # ---- backbone tiling ---------------------------------------------------
    # Batch tile: fill MXU rows (up to 128) without over-padding small batches.
    if B <= 8:
        tb = B
    else:
        tb = min(128, _round_up(B, 8))
    b_pad = _round_up(B, tb)
    if b_pad != B:
        xp = jnp.pad(xp, ((0, 0), (0, b_pad - B), (0, 0)))
    # Token tile: small bf16 slabs streamed through an "arbitrary" reduction
    # axis; per-buffer block stays at a few MiB even at tb=128 (v7x friendly).
    tn = 16 if N % 16 == 0 else (8 if N % 8 == 0 else N)
    n_steps = N // tn
    inv_n = 1.0 / N

    def backbone_kernel(patches_ref, wpe_ref, bpe_ref, gf_ref, acc_ref):
        n = pl.program_id(1)

        @pl.when(n == 0)
        def _():
            acc_ref[...] = jnp.zeros_like(acc_ref)

        # Token-by-token bf16 -> f32 accumulation: no [tb, tn, CPP] f32 temp.
        s = acc_ref[...]
        for t in range(tn):                                   # static, <= 16
            s = s + patches_ref[t].astype(jnp.float32)
        acc_ref[...] = s

        @pl.when(n == n_steps - 1)
        def _():
            pooled = (acc_ref[...] * inv_n).astype(jnp.bfloat16)    # [tb, CPP]
            gf_ref[...] = jnp.dot(pooled, wpe_ref[...],
                                  preferred_element_type=jnp.float32) + bpe_ref[...]

    gf = pl.pallas_call(
        backbone_kernel,
        out_shape=jax.ShapeDtypeStruct((b_pad, D), jnp.float32),
        grid_spec=pltpu.PrefetchScalarGridSpec(
            num_scalar_prefetch=0,
            grid=(b_pad // tb, n_steps),
            in_specs=[
                pl.BlockSpec((tn, tb, CPP), lambda b, n: (n, b, 0)),
                pl.BlockSpec((CPP, D), lambda b, n: (0, 0)),
                pl.BlockSpec((1, D), lambda b, n: (0, 0)),
            ],
            out_specs=pl.BlockSpec((tb, D), lambda b, n: (b, 0)),
            scratch_shapes=[pltpu.VMEM((tb, CPP), jnp.float32)],
        ),
        compiler_params=pltpu.CompilerParams(
            dimension_semantics=("parallel", "arbitrary"),
            vmem_limit_bytes=48 * 1024 * 1024),
    )(xp, w_pe, b_pe)
    gf = gf[:B]                        # drop batch padding before batch-stat BN

    # ---- bnneck: one-shot BN on the real batch rows -------------------------
    feat = pl.pallas_call(
        bn_kernel,
        out_shape=jax.ShapeDtypeStruct((B, D), jnp.bfloat16),
        in_specs=[pl.BlockSpec(memory_space=pltpu.MemorySpace.VMEM)] * 3,
        out_specs=pl.BlockSpec(memory_space=pltpu.MemorySpace.VMEM),
    )(gf, params["gamma"].astype(jnp.float32),
      params["beta"].astype(jnp.float32))

    # ---- classifier: class-tiled, lane-dense, bf16 weight stream -----------
    num_classes = params["w_cls"].shape[1]
    c_pad = _round_up(num_classes, 128)
    w_cls = params["w_cls"].astype(jnp.bfloat16)              # bf16 weight stream
    if c_pad != num_classes:
        w_cls = jnp.pad(w_cls, ((0, 0), (0, c_pad - num_classes)))
    tc = 128
    for cand in (2048, 1024, 512, 256, 128):                  # largest tile that divides
        if c_pad % cand == 0:
            tc = cand
            break

    b_cls = _round_up(B, 8)                                   # sublane-aligned M
    feat_p = feat if b_cls == B else jnp.pad(feat, ((0, b_cls - B), (0, 0)))

    cls_pad = pl.pallas_call(
        cls_kernel,
        out_shape=jax.ShapeDtypeStruct((b_cls, c_pad), jnp.float32),
        grid_spec=pltpu.PrefetchScalarGridSpec(
            num_scalar_prefetch=0,
            grid=(c_pad // tc,),
            in_specs=[
                pl.BlockSpec((b_cls, D), lambda j: (0, 0)),
                pl.BlockSpec((D, tc), lambda j: (0, j)),
            ],
            out_specs=pl.BlockSpec((b_cls, tc), lambda j: (0, j)),
        ),
        compiler_params=pltpu.CompilerParams(
            dimension_semantics=("parallel",),
            vmem_limit_bytes=32 * 1024 * 1024),
    )(feat_p, w_cls)
    cls_score = cls_pad[:B, :num_classes]

    # training-mode return of build_transformer.forward
    return cls_score, gf


if __name__ == "__main__":
    key = jax.random.PRNGKey(0)
    # Small shapes consistent with the module (real model: in_planes=768,
    # 3-channel 256x128 images, thousands of IDs; scaled down here).
    B, C, H, W = 2, 4, 16, 16
    P = 8                     # patch size -> 4 tokens
    D = 128                   # in_planes (768 in the real model)
    num_classes = 64          # padded to 128 lanes inside the wrapper

    k_x, k_pe, k_cls = jax.random.split(key, 3)
    x = jax.random.normal(k_x, (B, C, H, W), jnp.float32)

    cpp = C * P * P
    # backbone patch-embed: kaiming-style fan_in init, bias = 0
    w_pe = jax.random.normal(k_pe, (cpp, D), jnp.float32) * (2.0 / cpp) ** 0.5
    b_pe = jnp.zeros((1, D), jnp.float32)
    # bottleneck BN: weights_init_kaiming -> weight=1, bias=0 (bias frozen)
    gamma = jnp.ones((1, D), jnp.float32)
    beta = jnp.zeros((1, D), jnp.float32)
    # classifier: weights_init_classifier -> normal(std=0.001), no bias
    w_cls = jax.random.normal(k_cls, (D, num_classes), jnp.float32) * 0.001

    params = dict(patch=P, w_pe=w_pe, b_pe=b_pe,
                  gamma=gamma, beta=beta, w_cls=w_cls)

    cls_score, global_feat = build_transformer_forward(x, params)
    jax.block_until_ready((cls_score, global_feat))
    assert cls_score.shape == (B, num_classes)
    assert global_feat.shape == (B, D)
    assert bool(jnp.all(jnp.isfinite(cls_score)))
    assert bool(jnp.all(jnp.isfinite(global_feat)))
    print("KERNEL_OK")
</pallas_src>

<mosaic_0001>
module attributes {stable_mosaic.version = 11 : i64} {
  func.func @backbone_kernel(%arg0: i32, %arg1: i32, %arg2: memref<4x2x256xbf16, #tpu.memory_space<vmem>>, %arg3: memref<256x128xbf16, #tpu.memory_space<vmem>>, %arg4: memref<1x128xf32, #tpu.memory_space<vmem>>, %arg5: memref<2x128xf32, #tpu.memory_space<vmem>>, %arg6: memref<2x256xf32, #tpu.memory_space<vmem>>) attributes {dimension_semantics = [#tpu.dimension_semantics<parallel>, #tpu.dimension_semantics<arbitrary>], iteration_bounds = array<i64: 1, 1>, scalar_prefetch = 0 : i64, scratch_operands = 1 : i64, tpu.core_type = #tpu.core_type<tc>, window_params = [{transform_indices = @transform_0, window_bounds = array<i64: 4, 2, 256>}, {pipeline_mode = #tpu.pipeline_mode<synchronous>, transform_indices = @transform_1, window_bounds = array<i64: 256, 128>}, {pipeline_mode = #tpu.pipeline_mode<synchronous>, transform_indices = @transform_2, window_bounds = array<i64: 1, 128>}, {transform_indices = @transform_3, window_bounds = array<i64: 2, 128>}]} {
    %c0_i32 = arith.constant 0 : i32
    %0 = arith.cmpi eq, %arg1, %c0_i32 : i32
    %1 = arith.extui %0 : i1 to i32
    %c0_i32_0 = arith.constant 0 : i32
    %2 = arith.cmpi ne, %1, %c0_i32_0 : i32
    scf.if %2 {
      %cst = arith.constant 0.000000e+00 : f32
      %24 = vector.broadcast %cst : f32 to vector<2x256xf32>
      %c0_15 = arith.constant 0 : index
      %c0_16 = arith.constant 0 : index
      %25 = vector.load %arg6[%c0_15, %c0_16] : memref<2x256xf32, #tpu.memory_space<vmem>>, vector<2x256xf32>
      tpu.vector_store %arg6[%c0_15, %c0_16], %24 {strides = array<i32>} : memref<2x256xf32, #tpu.memory_space<vmem>>, vector<2x256xf32>,
    } else {
    }
    %c0 = arith.constant 0 : index
    %c0_1 = arith.constant 0 : index
    %3 = vector.load %arg6[%c0, %c0_1] : memref<2x256xf32, #tpu.memory_space<vmem>>, vector<2x256xf32>
    %c0_2 = arith.constant 0 : index
    %c0_3 = arith.constant 0 : index
    %c0_4 = arith.constant 0 : index
    %4 = vector.load %arg2[%c0_2, %c0_3, %c0_4] : memref<4x2x256xbf16, #tpu.memory_space<vmem>>, vector<1x2x256xbf16>
    %5 = vector.shape_cast %4 : vector<1x2x256xbf16> to vector<2x256xbf16>
    %6 = arith.extf %5 : vector<2x256xbf16> to vector<2x256xf32>
    %7 = arith.addf %3, %6 : vector<2x256xf32>
    %c1 = arith.constant 1 : index
    %c0_5 = arith.constant 0 : index
    %c0_6 = arith.constant 0 : index
    %8 = vector.load %arg2[%c1, %c0_5, %c0_6] : memref<4x2x256xbf16, #tpu.memory_space<vmem>>, vector<1x2x256xbf16>
    %9 = vector.shape_cast %8 : vector<1x2x256xbf16> to vector<2x256xbf16>
    %10 = arith.extf %9 : vector<2x256xbf16> to vector<2x256xf32>
    %11 = arith.addf %7, %10 : vector<2x256xf32>
    %c2 = arith.constant 2 : index
    %c0_7 = arith.constant 0 : index
    %c0_8 = arith.constant 0 : index
    %12 = vector.load %arg2[%c2, %c0_7, %c0_8] : memref<4x2x256xbf16, #tpu.memory_space<vmem>>, vector<1x2x256xbf16>
    %13 = vector.shape_cast %12 : vector<1x2x256xbf16> to vector<2x256xbf16>
    %14 = arith.extf %13 : vector<2x256xbf16> to vector<2x256xf32>
    %15 = arith.addf %11, %14 : vector<2x256xf32>
    %c3 = arith.constant 3 : index
    %c0_9 = arith.constant 0 : index
    %c0_10 = arith.constant 0 : index
    %16 = vector.load %arg2[%c3, %c0_9, %c0_10] : memref<4x2x256xbf16, #tpu.memory_space<vmem>>, vector<1x2x256xbf16>
    %17 = vector.shape_cast %16 : vector<1x2x256xbf16> to vector<2x256xbf16>
    %18 = arith.extf %17 : vector<2x256xbf16> to vector<2x256xf32>
    %19 = arith.addf %15, %18 : vector<2x256xf32>
    %c0_11 = arith.constant 0 : index
    %c0_12 = arith.constant 0 : index
    %20 = vector.load %arg6[%c0_11, %c0_12] : memref<2x256xf32, #tpu.memory_space<vmem>>, vector<2x256xf32>
    tpu.vector_store %arg6[%c0_11, %c0_12], %19 {strides = array<i32>} : memref<2x256xf32, #tpu.memory_space<vmem>>, vector<2x256xf32>,
    %c0_i32_13 = arith.constant 0 : i32
    %21 = arith.cmpi eq, %arg1, %c0_i32_13 : i32
    %22 = arith.extui %21 : i1 to i32
    %c0_i32_14 = arith.constant 0 : i32
    %23 = arith.cmpi ne, %22, %c0_i32_14 : i32
    scf.if %23 {
      %c0_15 = arith.constant 0 : index
      %c0_16 = arith.constant 0 : index
      %24 = vector.load %arg6[%c0_15, %c0_16] : memref<2x256xf32, #tpu.memory_space<vmem>>, vector<2x256xf32>
      %cst = arith.constant 2.500000e-01 : f32
      %25 = vector.broadcast %cst : f32 to vector<2x256xf32>
      %26 = arith.mulf %24, %25 : vector<2x256xf32>
      %27 = arith.truncf %26 : vector<2x256xf32> to vector<2x256xbf16>
      %c0_17 = arith.constant 0 : index
      %c0_18 = arith.constant 0 : index
      %28 = vector.load %arg3[%c0_17, %c0_18] : memref<256x128xbf16, #tpu.memory_space<vmem>>, vector<256x128xbf16>
      %cst_19 = arith.constant dense<0.000000e+00> : vector<2x128xf32>
      %29 = tpu.matmul %27, %28, %cst_19 {dimension_numbers = #tpu.dot_dimension_numbers<[1], [0], [0], [1], [0, 0, 1, 1], [], []>} : vector<2x256xbf16>, vector<256x128xbf16>, vector<2x128xf32> -> vector<2x128xf32>
      %c0_20 = arith.constant 0 : index
      %c0_21 = arith.constant 0 : index
      %30 = vector.load %arg4[%c0_20, %c0_21] : memref<1x128xf32, #tpu.memory_space<vmem>>, vector<1x128xf32>
      %31 = vector.broadcast %30 : vector<1x128xf32> to vector<2x128xf32>
      %32 = arith.addf %29, %31 : vector<2x128xf32>
      %c0_22 = arith.constant 0 : index
      %c0_23 = arith.constant 0 : index
      %33 = vector.load %arg5[%c0_22, %c0_23] : memref<2x128xf32, #tpu.memory_space<vmem>>, vector<2x128xf32>
      tpu.vector_store %arg5[%c0_22, %c0_23], %32 {strides = array<i32>} : memref<2x128xf32, #tpu.memory_space<vmem>>, vector<2x128xf32>,
    } else {
    }
    return
  }
  func.func @transform_0(%arg0: i32, %arg1: i32) -> (i32, i32, i32) {
    %c0_i32 = arith.constant 0 : i32
    %c0_i32_0 = arith.constant 0 : i32
    return %arg1, %arg0, %c0_i32 : i32, i32, i32
  }
  func.func @transform_1(%arg0: i32, %arg1: i32) -> (i32, i32) {
    %c0_i32 = arith.constant 0 : i32
    %c0_i32_0 = arith.constant 0 : i32
    %c0_i32_1 = arith.constant 0 : i32
    return %c0_i32, %c0_i32_0 : i32, i32
  }
  func.func @transform_2(%arg0: i32, %arg1: i32) -> (i32, i32) {
    %c0_i32 = arith.constant 0 : i32
    %c0_i32_0 = arith.constant 0 : i32
    %c0_i32_1 = arith.constant 0 : i32
    return %c0_i32, %c0_i32_0 : i32, i32
  }
  func.func @transform_3(%arg0: i32, %arg1: i32) -> (i32, i32) {
    %c0_i32 = arith.constant 0 : i32
    %c0_i32_0 = arith.constant 0 : i32
    return %arg0, %c0_i32 : i32, i32
  }
}

</mosaic_0001>

<llo_original>
// kernel: tpu_custom_call.1
$region0: #{tpu_custom_call.1}
  #allocation0 [shape = 'u32[]', space=smem, size = 0x4, offset = 0x4, fixed_abs, tag = 'smem constant byte address 0x4 - core index']
  #allocation1 [shape = 'u32[72,128]{1,0:T(1,128)}', space=vmem, size = 0x9000, scoped, tag = 'internal scratch']
  #allocation2 [shape = 'f32[2,256]{1,0:T(2,128)}', space=vmem, size = 0x800, scoped, tag = 'scratch operand']
  %s0 = inlined_call_operand.hbm [shape: bf16[4,2,256], index: 0, kind: input, shape index: {}]
  %s1 = inlined_call_operand.hbm [shape: bf16[256,128], index: 1, kind: input, shape index: {}]
  %s2 = inlined_call_operand.vmem [shape: f32[1,128], index: 2, kind: input, shape index: {}]
  %s3 = inlined_call_operand.hbm [shape: f32[2,128], index: 3, kind: output, shape index: {}]
  %s4 = sld [smem:[#allocation0]]
  $region38: #{tpu_custom_call.1} parent=0
    _
  %s6 = ssub.s32 1, %s4
  %s7 = scalar_select 0, %s6, %s4
  $region1: #{tpu_custom_call.1} parent=0
    #allocation3 [shape = 'u8[4096]{0}', space=vmem, size = 0x1000, scoped, tag = 'input window, operand 0, single buffered']
    #allocation4 [shape = 's32[1]{0}', space=sflag, size = 0x4, scoped, tag = 'scoped memory for tpu_custom_call.1']
    #allocation5 [shape = 's32[1]{0}', space=sflag, size = 0x4, scoped, tag = 'scoped memory for tpu_custom_call.1']
    #allocation6 [shape = 'u8[65536]{0}', space=vmem, size = 0x10000, scoped, tag = 'input window, operand 1, single buffered']
    #allocation7 [shape = 's32[1]{0}', space=sflag, size = 0x4, scoped, tag = 'scoped memory for tpu_custom_call.1']
    #allocation8 [shape = 'u8[1024]{0}', space=vmem, size = 0x400, scoped, tag = 'output window, operand 0, single buffered']
    %8 = vsyncpa [#allocation4], 0
    %9 = vsyncpa [#allocation7], 0
    %10 = vsyncpa [#allocation5], 0
    // Predicated region
    $region2: #{tpu_custom_call.1} parent=1 // pred_check
      _
    $region3: #{tpu_custom_call.1} parent=1 // pred_check_branch
      %12 = sbr.rel (0) target = $region5
    $region4: #{tpu_custom_call.1} parent=1 // pred_region
      %14 = vsyncadd [#allocation4], 0
      %s15 = sshll.u32 %s0, 4
      %s16 = int_to_ptr.hbm [resolvable:$true] %s15
      %s17 = sshll.u32 [#allocation3], 4
      %s18 = int_to_ptr.vmem [resolvable:$true] %s17
      %23 = dma.hbm_to_vmem [thread:$0]  %s16, 128, %s18, [#allocation4], 32, 32, 2
    $region5: #{tpu_custom_call.1} parent=1 // pred_fallthru
      _
    // Predicated region
    $region6: #{tpu_custom_call.1} parent=1 // pred_check
      _
    $region7: #{tpu_custom_call.1} parent=1 // pred_check_branch
      %25 = sbr.rel (0) target = $region9
    $region8: #{tpu_custom_call.1} parent=1 // pred_region
      %27 = vsyncadd [#allocation7], 0
      %s28 = sshll.u32 %s1, 4
      %s29 = int_to_ptr.hbm [resolvable:$true] %s28
      %s30 = sshll.u32 [#allocation6], 4
      %s31 = int_to_ptr.vmem [resolvable:$true] %s30
      %36 = dma.hbm_to_vmem [thread:$0]  %s29, 2048, %s31, [#allocation7], 64, 64, 4
    $region9: #{tpu_custom_call.1} parent=1 // pred_fallthru
      _
    // Predicated region
    $region10: #{tpu_custom_call.1} parent=1 // pred_check
      _
    $region11: #{tpu_custom_call.1} parent=1 // pred_check_branch
      %38 = sbr.rel (0) target = $region13
    $region12: #{tpu_custom_call.1} parent=1 // pred_region
      _
    $region13: #{tpu_custom_call.1} parent=1 // pred_fallthru
      _
    // Predicated region
    $region14: #{tpu_custom_call.1} parent=1 // pred_check
      _
    $region15: #{tpu_custom_call.1} parent=1 // pred_check_branch
      %40 = sbr.rel (0) target = $region17
    $region16: #{tpu_custom_call.1} parent=1 // pred_region
      %42 = dma.done [#allocation4], 128
    $region17: #{tpu_custom_call.1} parent=1 // pred_fallthru
      _
    // Predicated region
    $region18: #{tpu_custom_call.1} parent=1 // pred_check
      _
    $region19: #{tpu_custom_call.1} parent=1 // pred_check_branch
      %44 = sbr.rel (0) target = $region21
    $region20: #{tpu_custom_call.1} parent=1 // pred_region
      %46 = dma.done [#allocation7], 2048
    $region21: #{tpu_custom_call.1} parent=1 // pred_fallthru
      _
    %p47 = scmp.eq.s32.totalorder 0, 0
    // Predicated region
    $region22: #{tpu_custom_call.1} parent=1 // pred_check
      %p48 = pneg %p47
    $region23: #{tpu_custom_call.1} parent=1 // pred_check_branch
      %50 = sbr.rel (%p48) target = $region25
    $region24: #{tpu_custom_call.1} parent=1 // pred_region
      %51 = vst [vmem:[#allocation2] sm:$0xf] 0.0
    $region25: #{tpu_custom_call.1} parent=1 // pred_fallthru
      _
    %v52 = vld [vmem:[#allocation2] sm:$0xf]
    %v53 = vld [vmem:[#allocation3] sm:$0x3]
    %v54 = vunpack.c.l.bf16 %v53
    %v55 = vadd.f32 %v52, %v54
    %s56 = scalar_lea.vmem [#allocation3], 2
    %v57 = vld [vmem:[%s56] sm:$0x3]
    %v58 = vunpack.c.l.bf16 %v57
    %v59 = vadd.f32 %v55, %v58
    %s60 = scalar_lea.vmem [#allocation3], 4
    %v61 = vld [vmem:[%s60] sm:$0x3]
    %v62 = vunpack.c.l.bf16 %v61
    %v63 = vadd.f32 %v59, %v62
    %s64 = scalar_lea.vmem [#allocation3], 6
    %v65 = vld [vmem:[%s64] sm:$0x3]
    %v66 = vunpack.c.l.bf16 %v65
    %v67 = vadd.f32 %v63, %v66
    %68 = vst [vmem:[#allocation2] sm:$0xf] %v67
    // Predicated region
    $region26: #{tpu_custom_call.1} parent=1 // pred_check
      %p69 = pneg %p47
    $region27: #{tpu_custom_call.1} parent=1 // pred_check_branch
      %71 = sbr.rel (%p69) target = $region29
    $region28: #{tpu_custom_call.1} parent=1 // pred_region
      %v72 = vld [vmem:[#allocation2] sm:$0xf]
      %v73 = vmul.f32 %v72, 0.25
      %75 = vst [vmem:[#allocation1] ss:$4 sm:$0xff] %v73
      %v76 = vld.sshfl [vmem:[#allocation1] sm:$0xff pattern:$0x73625140]
      %v77 = vld.sshfl [vmem:[#allocation1 + $0x8] sm:$0xff pattern:$0x73625140]
      %v80 = vpack.c.bf16 %v76, %v76
      %v81 = vpack.c.bf16 %v77, %v77
      %v82 = vld [vmem:[#allocation6] sm:$0xf]
      %v83 = vld [vmem:[#allocation6 + $0x4] sm:$0xf]
      %v84 = vld [vmem:[#allocation6 + $0x8] sm:$0xf]
      %v85 = vld [vmem:[#allocation6 + $0xc] sm:$0xf]
      %v86 = vld [vmem:[#allocation6 + $0x10] sm:$0xf]
      %v87 = vld [vmem:[#allocation6 + $0x14] sm:$0xf]
      %v88 = vld [vmem:[#allocation6 + $0x18] sm:$0xf]
      %v89 = vld [vmem:[#allocation6 + $0x1c] sm:$0xf]
      %v90 = vld [vmem:[#allocation6 + $0x20] sm:$0xf]
      %v91 = vld [vmem:[#allocation6 + $0x24] sm:$0xf]
      %v92 = vld [vmem:[#allocation6 + $0x28] sm:$0xf]
      %v93 = vld [vmem:[#allocation6 + $0x2c] sm:$0xf]
      %v94 = vld [vmem:[#allocation6 + $0x30] sm:$0xf]
      %v95 = vld [vmem:[#allocation6 + $0x34] sm:$0xf]
      %v96 = vld [vmem:[#allocation6 + $0x38] sm:$0xf]
      %v97 = vld [vmem:[#allocation6 + $0x3c] sm:$0xf]
      %v98 = vld [vmem:[#allocation6 + $0x40] sm:$0xf]
      %v99 = vld [vmem:[#allocation6 + $0x44] sm:$0xf]
      %v100 = vld [vmem:[#allocation6 + $0x48] sm:$0xf]
      %v101 = vld [vmem:[#allocation6 + $0x4c] sm:$0xf]
      %v102 = vld [vmem:[#allocation6 + $0x50] sm:$0xf]
      %v103 = vld [vmem:[#allocation6 + $0x54] sm:$0xf]
      %v104 = vld [vmem:[#allocation6 + $0x58] sm:$0xf]
      %v105 = vld [vmem:[#allocation6 + $0x5c] sm:$0xf]
      %v106 = vld [vmem:[#allocation6 + $0x60] sm:$0xf]
      %v107 = vld [vmem:[#allocation6 + $0x64] sm:$0xf]
      %v108 = vld [vmem:[#allocation6 + $0x68] sm:$0xf]
      %v109 = vld [vmem:[#allocation6 + $0x6c] sm:$0xf]
      %v110 = vld [vmem:[#allocation6 + $0x70] sm:$0xf]
      %v111 = vld [vmem:[#allocation6 + $0x74] sm:$0xf]
      %v112 = vld [vmem:[#allocation6 + $0x78] sm:$0xf]
      %v113 = vld [vmem:[#allocation6 + $0x7c] sm:$0xf]
      %v114 = vld [vmem:[%s2] sm:$0x1]
      %v116 = vperm.slane %v114, 0
      %v150 = vunpack.c.l.b16 %v82
      %v151 = vunpack.c.l.b16 %v83
      %v152 = vunpack.c.l.b16 %v84
      %v153 = vunpack.c.l.b16 %v85
      %v154 = vunpack.c.l.b16 %v86
      %v155 = vunpack.c.l.b16 %v87
      %v156 = vunpack.c.l.b16 %v88
      %v157 = vunpack.c.l.b16 %v89
      %v158 = vunpack.c.l.b16 %v90
      %v159 = vunpack.c.l.b16 %v91
      %v160 = vunpack.c.l.b16 %v92
      %v161 = vunpack.c.l.b16 %v93
      %v162 = vunpack.c.l.b16 %v94
      %v163 = vunpack.c.l.b16 %v95
      %v164 = vunpack.c.l.b16 %v96
      %v165 = vunpack.c.l.b16 %v97
      %v166 = vunpack.c.l.b16 %v98
      %v167 = vunpack.c.l.b16 %v99
      %v168 = vunpack.c.l.b16 %v100
      %v169 = vunpack.c.l.b16 %v101
      %v170 = vunpack.c.l.b16 %v102
      %v171 = vunpack.c.l.b16 %v103
      %v172 = vunpack.c.l.b16 %v104
      %v173 = vunpack.c.l.b16 %v105
      %v174 = vunpack.c.l.b16 %v106
      %v175 = vunpack.c.l.b16 %v107
      %v176 = vunpack.c.l.b16 %v108
      %v177 = vunpack.c.l.b16 %v109
      %v178 = vunpack.c.l.b16 %v110
      %v179 = vunpack.c.l.b16 %v111
      %v180 = vunpack.c.l.b16 %v112
      %v181 = vunpack.c.l.b16 %v113
      %v182 = vpack.c.b16 %v151, %v150
      %v183 = vpack.c.b16 %v153, %v152
      %v184 = vpack.c.b16 %v155, %v154
      %v185 = vpack.c.b16 %v157, %v156
      %v186 = vpack.c.b16 %v159, %v158
      %v187 = vpack.c.b16 %v161, %v160
      %v188 = vpack.c.b16 %v163, %v162
      %v189 = vpack.c.b16 %v165, %v164
      %v190 = vpack.c.b16 %v167, %v166
      %v191 = vpack.c.b16 %v169, %v168
      %v192 = vpack.c.b16 %v171, %v170
      %v193 = vpack.c.b16 %v173, %v172
      %v194 = vpack.c.b16 %v175, %v174
      %v195 = vpack.c.b16 %v177, %v176
      %v196 = vpack.c.b16 %v179, %v178
      %v197 = vpack.c.b16 %v181, %v180
      %214 = vmatpush.bf16.msra.mxu0 %v189
      %215 = vmatpush.bf16.msra.mxu0 %v188
      %216 = vmatpush.bf16.msra.mxu0 %v187
      %217 = vmatpush.bf16.msra.mxu0 %v186
      %218 = vmatpush.bf16.msra.mxu0 %v185
      %219 = vmatpush.bf16.msra.mxu0 %v184
      %220 = vmatpush.bf16.msra.mxu0 %v183
      %221 = vmatpush.bf16.msra.mxu0 %v182
      %222 = vmatmul.bf16.gmra.mxu0 %v80
      %v223 = vpop.f32.mrf.mxu0
      %v224 = vadd.f32 %v116, %v223
      %v225 = vpop.f32.mrf.mxu0
      %226 = vdwg.mxu0
      %227 = vmatpush.bf16.msra.mxu0 %v197
      %228 = vmatpush.bf16.msra.mxu0 %v196
      %229 = vmatpush.bf16.msra.mxu0 %v195
      %230 = vmatpush.bf16.msra.mxu0 %v194
      %231 = vmatpush.bf16.msra.mxu0 %v193
      %232 = vmatpush.bf16.msra.mxu0 %v192
      %233 = vmatpush.bf16.msra.mxu0 %v191
      %234 = vmatpush.bf16.msra.mxu0 %v190
      %235 = vmatmul.bf16.gmra.mxu0 %v81
      %v236 = vpop.f32.mrf.mxu0
      %v237 = vadd.f32 %v224, %v236
      %v238 = vpop.f32.mrf.mxu0
      %239 = vdwg.mxu0
      %240 = vst [vmem:[#allocation8] sm:$0x3] %v237
    $region29: #{tpu_custom_call.1} parent=1 // pred_fallthru
      _
    // Predicated region
    $region30: #{tpu_custom_call.1} parent=1 // pred_check
      _
    $region31: #{tpu_custom_call.1} parent=1 // pred_check_branch
      %242 = sbr.rel (0) target = $region33
    $region32: #{tpu_custom_call.1} parent=1 // pred_region
      %244 = vsyncadd [#allocation5], 0
      %s246 = sshll.u32 [#allocation8], 4
      %s247 = int_to_ptr.vmem [resolvable:$true] %s246
      %s248 = sshll.u32 %s3, 4
      %s249 = int_to_ptr.hbm [resolvable:$true] %s248
      %251 = dma.vmem_to_hbm [thread:$0]  %s247, 32, %s249, [#allocation5]
    $region33: #{tpu_custom_call.1} parent=1 // pred_fallthru
      _
    // Predicated region
    $region34: #{tpu_custom_call.1} parent=1 // pred_check
      _
    $region35: #{tpu_custom_call.1} parent=1 // pred_check_branch
      %253 = sbr.rel (0) target = $region37
    $region36: #{tpu_custom_call.1} parent=1 // pred_region
      %255 = dma.done [#allocation5], 32
    $region37: #{tpu_custom_call.1} parent=1 // pred_fallthru
      _
    %256 = vsyncpa [#allocation4], 1
    %257 = vsyncpa [#allocation7], 1
    %258 = vsyncpa [#allocation5], 1

</llo_original>
